<compile_context>
chip_gen: v7x
topology: tpu7x:2x2x1
jax: 0.10.0
libtpu: 0.0.40
codegen_flags: <defaults>
</compile_context>

<pallas_src>
import functools

import jax
import jax.numpy as jnp
from jax.experimental import pallas as pl
from jax.experimental.pallas import tpu as pltpu

_LANE = 128
_SUBLANE = 8


def _round_up(x, m):
    return ((x + m - 1) // m) * m


def _encoder_kernel(ids_ref, table_ref, out_ref):
    # ids_ref   : (1, 1, TB)            int32  (lane-major ids for this batch tile)
    # table_ref : (n_sym_pad, code_pad) f32    (precomputed id -> code table, VMEM-resident)
    # out_ref   : (TB, code_pad)        f32
    ids = ids_ref[0]                                        # (1, TB) int32
    n_sym_pad = table_ref.shape[0]
    tb = ids.shape[-1]

    # Embedding/MLP lookup as a one-hot matmul on the MXU:
    #   onehot_t[n, b] = (ids[b] == n);  out[b, c] = sum_n onehot_t[n, b] * table[n, c]
    sym = jax.lax.broadcasted_iota(jnp.int32, (n_sym_pad, tb), 0)
    onehot_t = (sym == ids).astype(table_ref.dtype)         # (n_sym_pad, TB)
    out = jax.lax.dot_general(
        onehot_t, table_ref[...],
        dimension_numbers=(((0,), (0,)), ((), ())),
        preferred_element_type=jnp.float32)                 # (TB, code_pad)
    out_ref[...] = out.astype(out_ref.dtype)


def prepare_encoder_params(emb_table, w1, b1, w2, b2):
    """One-time parameter prep.

    Folds the full MLP into a (n_sym_pad, code_pad) lookup table:
        table = relu(relu(E @ W1^T + b1) @ W2^T + b2)
    padded so rows are a sublane multiple and columns a lane multiple.

    PyTorch convention: w1 (hidden, hidden), w2 (code, hidden), b* 1-D.
    Returns (table, code_size) with code_size a plain Python int (kept static).
    """
    n_symbol, _hidden = emb_table.shape
    code_size = int(w2.shape[0])
    n_sym_pad = _round_up(n_symbol, _SUBLANE)
    code_pad = _round_up(code_size, _LANE)

    emb = jnp.asarray(emb_table, jnp.float32)
    h = jnp.maximum(emb @ jnp.asarray(w1, jnp.float32).T
                    + jnp.asarray(b1, jnp.float32), 0.0)            # (n_symbol, H)
    t = jnp.maximum(h @ jnp.asarray(w2, jnp.float32).T
                    + jnp.asarray(b2, jnp.float32), 0.0)            # (n_symbol, code)

    table = jnp.zeros((n_sym_pad, code_pad), jnp.float32)
    table = table.at[:n_symbol, :code_size].set(t)
    return table, code_size


@functools.partial(jax.jit, static_argnames=("code_size", "block_b"))
def encoder_forward(numbers, table, *, code_size, block_b=1024):
    """numbers: int[B]; table from prepare_encoder_params. Returns f32 (B, code_size)."""
    n_sym_pad, code_pad = table.shape
    B = numbers.shape[0]

    # Batch tile: multiple of 8, default 1024 (grid-overhead bound, not VMEM bound).
    b_pad_min = _round_up(B, _SUBLANE)
    tb = min(_round_up(block_b, _SUBLANE), b_pad_min)
    # v7x: prefer >= 2 grid blocks so ("parallel",) can shard across both TCs.
    if b_pad_min // tb < 2 and b_pad_min >= 2 * _SUBLANE:
        tb = _round_up((b_pad_min + 1) // 2, _SUBLANE)
    b_pad = _round_up(B, tb)
    num_blocks = b_pad // tb

    # Lane-major ids: (num_blocks, 1, TB); pad rows use id 0 (sliced off below).
    ids = jnp.zeros((b_pad,), jnp.int32).at[:B].set(numbers.astype(jnp.int32))
    ids = ids.reshape(num_blocks, 1, tb)

    flops = 2 * b_pad * n_sym_pad * code_pad
    bytes_accessed = (4 * b_pad                      # ids
                      + table.size * table.dtype.itemsize
                      + 4 * b_pad * code_pad)        # output

    out_padded = pl.pallas_call(
        _encoder_kernel,
        out_shape=jax.ShapeDtypeStruct((b_pad, code_pad), jnp.float32),
        grid=(num_blocks,),
        in_specs=[
            pl.BlockSpec((1, 1, tb), lambda i: (i, 0, 0)),       # ids: streamed per tile
            pl.BlockSpec(table.shape, lambda i: (0, 0)),         # table: VMEM-resident
        ],
        out_specs=pl.BlockSpec((tb, code_pad), lambda i: (i, 0)),
        compiler_params=pltpu.CompilerParams(
            dimension_semantics=("parallel",)),
        cost_estimate=pl.CostEstimate(
            flops=int(flops), transcendentals=0, bytes_accessed=int(bytes_accessed)),
    )(ids, table)

    return out_padded[:B, :code_size]


if __name__ == "__main__":
    n_symbol, hidden_size, code_size = 10, 64, 100
    B = 8

    key = jax.random.PRNGKey(0)
    k_emb, k_w1, k_b1, k_w2, k_b2, k_ids = jax.random.split(key, 6)

    # Deterministic synthetic parameters (shapes follow nn.Embedding / nn.Linear).
    emb_table = jax.random.normal(k_emb, (n_symbol, hidden_size), jnp.float32)
    w1 = jax.random.normal(k_w1, (hidden_size, hidden_size), jnp.float32) * 0.1
    b1 = jax.random.normal(k_b1, (hidden_size,), jnp.float32) * 0.1
    w2 = jax.random.normal(k_w2, (code_size, hidden_size), jnp.float32) * 0.1
    b2 = jax.random.normal(k_b2, (code_size,), jnp.float32) * 0.1

    numbers = jax.random.randint(k_ids, (B,), 0, n_symbol, jnp.int32)

    # One-time param prep (MLP folded into an id -> code lookup table).
    table, code_sz = prepare_encoder_params(emb_table, w1, b1, w2, b2)

    out = encoder_forward(numbers, table, code_size=code_sz)
    out = jax.block_until_ready(out)

    # Reference (plain JAX) check of the exact forward semantics.
    ref = emb_table[numbers]
    ref = jnp.maximum(ref @ w1.T + b1, 0.0)
    ref = jnp.maximum(ref @ w2.T + b2, 0.0)
    assert out.shape == (B, code_size)
    assert jnp.allclose(out, ref, atol=1e-5, rtol=1e-5)

    print("KERNEL_OK")
</pallas_src>

<mosaic_0001>
module attributes {stable_mosaic.version = 11 : i64} {
  func.func @_encoder_kernel(%arg0: i32, %arg1: memref<1x1x8xi32, #tpu.memory_space<vmem>>, %arg2: memref<16x128xf32, #tpu.memory_space<vmem>>, %arg3: memref<8x128xf32, #tpu.memory_space<vmem>>) attributes {dimension_semantics = [#tpu.dimension_semantics<parallel>], iteration_bounds = array<i64: 1>, scalar_prefetch = 0 : i64, scratch_operands = 0 : i64, tpu.core_type = #tpu.core_type<tc>, window_params = [{transform_indices = @transform_0, window_bounds = array<i64: 1, 1, 8>}, {pipeline_mode = #tpu.pipeline_mode<synchronous>, transform_indices = @transform_1, window_bounds = array<i64: 16, 128>}, {transform_indices = @transform_2, window_bounds = array<i64: 8, 128>}]} {
    %c0 = arith.constant 0 : index
    %c0_0 = arith.constant 0 : index
    %c0_1 = arith.constant 0 : index
    %0 = vector.load %arg1[%c0, %c0_0, %c0_1] : memref<1x1x8xi32, #tpu.memory_space<vmem>>, vector<1x1x8xi32>
    %1 = vector.shape_cast %0 : vector<1x1x8xi32> to vector<1x8xi32>
    %2 = tpu.iota {dimensions = array<i32: 0>} : vector<16x8xi32>
    %3 = vector.broadcast %1 : vector<1x8xi32> to vector<16x8xi32>
    %4 = arith.cmpi eq, %2, %3 : vector<16x8xi32>
    %5 = arith.extui %4 : vector<16x8xi1> to vector<16x8xi32>
    %6 = arith.sitofp %5 : vector<16x8xi32> to vector<16x8xf32>
    %c0_2 = arith.constant 0 : index
    %c0_3 = arith.constant 0 : index
    %7 = vector.load %arg2[%c0_2, %c0_3] : memref<16x128xf32, #tpu.memory_space<vmem>>, vector<16x128xf32>
    %cst = arith.constant dense<0.000000e+00> : vector<8x128xf32>
    %8 = tpu.matmul %6, %7, %cst {dimension_numbers = #tpu.dot_dimension_numbers<[0], [0], [1], [1], [0, 1, 1, 1], [], []>} : vector<16x8xf32>, vector<16x128xf32>, vector<8x128xf32> -> vector<8x128xf32>
    %c0_4 = arith.constant 0 : index
    %c0_5 = arith.constant 0 : index
    %9 = vector.load %arg3[%c0_4, %c0_5] : memref<8x128xf32, #tpu.memory_space<vmem>>, vector<8x128xf32>
    tpu.vector_store %arg3[%c0_4, %c0_5], %8 {strides = array<i32>} : memref<8x128xf32, #tpu.memory_space<vmem>>, vector<8x128xf32>,
    return
  }
  func.func @transform_0(%arg0: i32) -> (i32, i32, i32) {
    %c0_i32 = arith.constant 0 : i32
    %c0_i32_0 = arith.constant 0 : i32
    %c0_i32_1 = arith.constant 0 : i32
    return %arg0, %c0_i32, %c0_i32_0 : i32, i32, i32
  }
  func.func @transform_1(%arg0: i32) -> (i32, i32) {
    %c0_i32 = arith.constant 0 : i32
    %c0_i32_0 = arith.constant 0 : i32
    %c0_i32_1 = arith.constant 0 : i32
    return %c0_i32, %c0_i32_0 : i32, i32
  }
  func.func @transform_2(%arg0: i32) -> (i32, i32) {
    %c0_i32 = arith.constant 0 : i32
    %c0_i32_0 = arith.constant 0 : i32
    return %arg0, %c0_i32 : i32, i32
  }
}

</mosaic_0001>

<llo_original>
// kernel: encoder_forward.1
$region0: #{encoder_forward.1}
  #allocation0 [shape = 'u32[]', space=smem, size = 0x4, offset = 0x4, fixed_abs, tag = 'smem constant byte address 0x4 - core index']
  #allocation1 [shape = 'u32[144,128]{1,0:T(1,128)}', space=vmem, size = 0x12000, scoped, tag = 'internal scratch']
  %s0 = inlined_call_operand.vmem [shape: s32[1,1,8], index: 0, kind: input, shape index: {}]
  %s1 = inlined_call_operand.hbm [shape: f32[16,128], index: 1, kind: input, shape index: {}]
  %s2 = inlined_call_operand.hbm [shape: f32[8,128], index: 2, kind: output, shape index: {}]
  %s3 = sld [smem:[#allocation0]]
  $region22: #{encoder_forward.1} parent=0
    _
  %s5 = ssub.s32 1, %s3
  %s6 = scalar_select 0, %s5, %s3
  $region1: #{encoder_forward.1} parent=0
    #allocation2 [shape = 'u8[8192]{0}', space=vmem, size = 0x2000, scoped, tag = 'input window, operand 1, single buffered']
    #allocation3 [shape = 's32[1]{0}', space=sflag, size = 0x4, scoped, tag = 'scoped memory for encoder_forward.1']
    #allocation4 [shape = 's32[1]{0}', space=sflag, size = 0x4, scoped, tag = 'scoped memory for encoder_forward.1']
    #allocation5 [shape = 'u8[4096]{0}', space=vmem, size = 0x1000, scoped, tag = 'output window, operand 0, single buffered']
    %7 = vsyncpa [#allocation3], 0
    %8 = vsyncpa [#allocation4], 0
    // Predicated region
    $region2: #{encoder_forward.1} parent=1 // pred_check
      _
    $region3: #{encoder_forward.1} parent=1 // pred_check_branch
      %10 = sbr.rel (0) target = $region5
    $region4: #{encoder_forward.1} parent=1 // pred_region
      _
    $region5: #{encoder_forward.1} parent=1 // pred_fallthru
      _
    // Predicated region
    $region6: #{encoder_forward.1} parent=1 // pred_check
      _
    $region7: #{encoder_forward.1} parent=1 // pred_check_branch
      %12 = sbr.rel (0) target = $region9
    $region8: #{encoder_forward.1} parent=1 // pred_region
      %s14 = ssub.s32 256, 256
      %15 = vsyncadd [#allocation3], %s14
      %s16 = sshll.u32 [#allocation2], 4
      %s17 = int_to_ptr.vmem [resolvable:$true] %s16
      %22 = dma.hbm_to_vmem [thread:$0]  %s1, 256, %s17, [#allocation3], 128, 128, 8
    $region9: #{encoder_forward.1} parent=1 // pred_fallthru
      _
    // Predicated region
    $region10: #{encoder_forward.1} parent=1 // pred_check
      _
    $region11: #{encoder_forward.1} parent=1 // pred_check_branch
      %24 = sbr.rel (0) target = $region13
    $region12: #{encoder_forward.1} parent=1 // pred_region
      %25 = dma.done [#allocation3], 256
    $region13: #{encoder_forward.1} parent=1 // pred_fallthru
      _
    %v26 = vld [vmem:[%s0] sm:$0x1]
    %v27 = vlaneseq
    %v28 = vshrl.u32 %v27, 7
    %v29 = vadd.s32 %v28, 8
    %v30 = vlaneseq
    %v31 = vshrl.u32 %v30, 7
    %v32 = vsub.s32 0, %v31
    %v33 = vrot.slane %v26, %v32
    %vm34 = vcmp.eq.s32.totalorder %v28, %v33
    %vm35 = vcmp.eq.s32.totalorder %v29, %v33
    %v36 = vsel %vm34, 1, 0
    %v37 = vsel %vm35, 1, 0
    %v38 = vcvt.s32.f32 %v36
    %v39 = vcvt.s32.f32 %v37
    %v40 = vld [vmem:[#allocation2] sm:$0xff]
    %v41 = vld [vmem:[#allocation2 + $0x8] sm:$0xff]
    %42 = vxpose.xlu0.b32.start [1/16] %v38, 128
    %43 = vxpose.xlu0.b32.cont [2/16] %v39, 128
    %44 = vxpose.xlu0.b32.cont [3/16] 0.0, 128
    %45 = vxpose.xlu0.b32.cont [4/16] 0.0, 128
    %46 = vxpose.xlu0.b32.cont [5/16] 0.0, 128
    %47 = vxpose.xlu0.b32.cont [6/16] 0.0, 128
    %48 = vxpose.xlu0.b32.cont [7/16] 0.0, 128
    %49 = vxpose.xlu0.b32.cont [8/16] 0.0, 128
    %50 = vxpose.xlu0.b32.cont [9/16] 0.0, 128
    %51 = vxpose.xlu0.b32.cont [10/16] 0.0, 128
    %52 = vxpose.xlu0.b32.cont [11/16] 0.0, 128
    %53 = vxpose.xlu0.b32.cont [12/16] 0.0, 128
    %54 = vxpose.xlu0.b32.cont [13/16] 0.0, 128
    %55 = vxpose.xlu0.b32.cont [14/16] 0.0, 128
    %56 = vxpose.xlu0.b32.cont [15/16] 0.0, 128
    %57 = vxpose.xlu0.b32.end [16/16] 0.0, 128
    %v58 = vpop.trf.xlu0
    %v59 = vpop.trf.xlu0
    %v60 = vpop.trf.xlu0
    %v61 = vpop.trf.xlu0
    %v62 = vpop.trf.xlu0
    %v63 = vpop.trf.xlu0
    %v64 = vpop.trf.xlu0
    %v65 = vpop.trf.xlu0
    %v66 = vpop.trf.xlu0
    %v67 = vpop.trf.xlu0
    %v68 = vpop.trf.xlu0
    %v69 = vpop.trf.xlu0
    %v70 = vpop.trf.xlu0
    %v71 = vpop.trf.xlu0
    %v72 = vpop.trf.xlu0
    %v73 = vpop.trf.xlu0
    %vm74 = vcmask 130048
    %v76 = vsel %vm74, %v58, 0
    %78 = vmatprep.subr.mxu0 0.0
    %79 = vmatpush1.msra.mxu0 %v40
    %80 = vmatprep.subr.mxu0 0.0
    %81 = vmatpush1.msra.mxu0 %v41
    %82 = vmatprep.subr.mxu0 0.0
    %83 = vmatpush1.msra.mxu0 0.0
    %84 = vmatprep.subr.mxu0 0.0
    %85 = vmatpush1.msra.mxu0 0.0
    %86 = vmatprep.subr.mxu0 0.0
    %87 = vmatpush1.msra.mxu0 0.0
    %88 = vmatprep.subr.mxu0 0.0
    %89 = vmatpush1.msra.mxu0 0.0
    %90 = vmatprep.subr.mxu0 0.0
    %91 = vmatpush1.msra.mxu0 0.0
    %92 = vmatprep.subr.mxu0 0.0
    %93 = vmatpush1.msra.mxu0 0.0
    %94 = vmatprep.subr.mxu0 0.0
    %95 = vmatpush1.msra.mxu0 0.0
    %96 = vmatprep.subr.mxu0 0.0
    %97 = vmatpush1.msra.mxu0 0.0
    %98 = vmatprep.subr.mxu0 0.0
    %99 = vmatpush1.msra.mxu0 0.0
    %100 = vmatprep.subr.mxu0 0.0
    %101 = vmatpush1.msra.mxu0 0.0
    %102 = vmatprep.subr.mxu0 0.0
    %103 = vmatpush1.msra.mxu0 0.0
    %104 = vmatprep.subr.mxu0 0.0
    %105 = vmatpush1.msra.mxu0 0.0
    %106 = vmatprep.subr.mxu0 0.0
    %107 = vmatpush1.msra.mxu0 0.0
    %108 = vmatprep.subr.mxu0 0.0
    %109 = vmatpush1.msra.mxu0 0.0
    %110 = vmatprep.subr.mxu0 0.0
    %111 = vmatpush1.msra.mxu0 0.0
    %112 = vmatprep.subr.mxu0 0.0
    %113 = vmatpush1.msra.mxu0 0.0
    %114 = vmatprep.subr.mxu0 0.0
    %115 = vmatpush1.msra.mxu0 0.0
    %116 = vmatprep.subr.mxu0 0.0
    %117 = vmatpush1.msra.mxu0 0.0
    %118 = vmatprep.subr.mxu0 0.0
    %119 = vmatpush1.msra.mxu0 0.0
    %120 = vmatprep.subr.mxu0 0.0
    %121 = vmatpush1.msra.mxu0 0.0
    %122 = vmatprep.subr.mxu0 0.0
    %123 = vmatpush1.msra.mxu0 0.0
    %124 = vmatprep.subr.mxu0 0.0
    %125 = vmatpush1.msra.mxu0 0.0
    %126 = vmatprep.subr.mxu0 0.0
    %127 = vmatpush1.msra.mxu0 0.0
    %128 = vmatprep.subr.mxu0 0.0
    %129 = vmatpush1.msra.mxu0 0.0
    %130 = vmatprep.subr.mxu0 0.0
    %131 = vmatpush1.msra.mxu0 0.0
    %132 = vmatprep.subr.mxu0 0.0
    %133 = vmatpush1.msra.mxu0 0.0
    %134 = vmatprep.subr.mxu0 0.0
    %135 = vmatpush1.msra.mxu0 0.0
    %136 = vmatprep.subr.mxu0 0.0
    %137 = vmatpush1.msra.mxu0 0.0
    %138 = vmatprep.subr.mxu0 0.0
    %139 = vmatpush1.msra.mxu0 0.0
    %140 = vmatprep.subr.mxu0 0.0
    %141 = vmatpush1.msra.mxu0 0.0
    %142 = vmatprep.mubr.f32.mxu0 0.0
    %143 = vmatmul.mubr.f32.gmra.mrb[0].mxu0 %v76
    %v144 = vpop.f32.mrb[0].mxu0
    %v145 = vadd.f32 0.0, %v144
    %v146 = vpop.f32.mrb[0].mxu0
    %147 = vdwg.mxu0
    %148 = vst [vmem:[#allocation5] sm:$0xff] %v145
    // Predicated region
    $region14: #{encoder_forward.1} parent=1 // pred_check
      _
    $region15: #{encoder_forward.1} parent=1 // pred_check_branch
      %150 = sbr.rel (0) target = $region17
    $region16: #{encoder_forward.1} parent=1 // pred_region
      %s152 = ssub.s32 128, 128
      %153 = vsyncadd [#allocation4], %s152
      %s155 = sshll.u32 [#allocation5], 4
      %s156 = int_to_ptr.vmem [resolvable:$true] %s155
      %158 = dma.vmem_to_hbm [thread:$0]  %s156, 128, %s2, [#allocation4]
    $region17: #{encoder_forward.1} parent=1 // pred_fallthru
      _
    // Predicated region
    $region18: #{encoder_forward.1} parent=1 // pred_check
      _
    $region19: #{encoder_forward.1} parent=1 // pred_check_branch
      %160 = sbr.rel (0) target = $region21
    $region20: #{encoder_forward.1} parent=1 // pred_region
      %161 = dma.done [#allocation4], 128
    $region21: #{encoder_forward.1} parent=1 // pred_fallthru
      _
    %162 = vsyncpa [#allocation3], 1
    %163 = vsyncpa [#allocation4], 1

</llo_original>
